<compile_context>
chip_gen: v6e
topology: v6e:2x2x1
jax: 0.10.0
libtpu: 0.0.40
codegen_flags: <defaults>
</compile_context>

<pallas_src>
import math

import jax
import jax.numpy as jnp
from jax.experimental import pallas as pl
from jax.experimental.pallas import tpu as pltpu


def _erf(x):
    # Abramowitz & Stegun 7.1.26 polynomial erf (|abs err| <= 1.5e-7), built only from
    # exp/abs/where (guaranteed Mosaic lowering). Matches nn.GELU()'s exact erf-based
    # activation to ~1e-6.
    a1, a2, a3, a4, a5 = (0.254829592, -0.284496736, 1.421413741,
                          -1.453152027, 1.061405429)
    p = 0.3275911
    ax = jnp.abs(x)
    t = 1.0 / (1.0 + p * ax)
    poly = ((((a5 * t + a4) * t + a3) * t + a2) * t + a1) * t
    y = 1.0 - poly * jnp.exp(-(ax * ax))
    return jnp.where(x >= 0, y, -y)


def _gelu_exact(x):
    # 0.5 * x * (1 + erf(x / sqrt(2)))  -- PyTorch nn.GELU() default ('none' approx).
    return 0.5 * x * (1.0 + _erf(x * 0.7071067811865476))


def _mlp_kernel(x_ref, w1_ref, b1_ref, w2_ref, b2_ref, o_ref):
    x = x_ref[...]                                              # (tm, d_in)
    h = jnp.dot(x, w1_ref[...],
                preferred_element_type=jnp.float32,
                precision=jax.lax.Precision.HIGHEST)            # (tm, hidden) f32
    h = h + b1_ref[...].astype(jnp.float32)                     # (1, hidden) broadcast
    h = _gelu_exact(h)
    y = jnp.dot(h.astype(w2_ref.dtype), w2_ref[...],
                preferred_element_type=jnp.float32,
                precision=jax.lax.Precision.HIGHEST)            # (tm, d_out) f32
    y = y + b2_ref[...].astype(jnp.float32)
    o_ref[...] = y.astype(o_ref.dtype)                          # single cast at store


def _round_up(x, m):
    return (x + m - 1) // m * m


def _pick_block_rows(m, d_in, hidden, d_out, itemsize,
                     budget_bytes=4 * 1024 * 1024):
    # Bytes per row: double-buffered x & out tiles + the f32 intermediate.
    per_row = 2 * (d_in + d_out) * itemsize + hidden * 4
    tm = budget_bytes // max(per_row, 1)
    tm = max(8, min(512, tm))
    tm = min(tm, _round_up(m, 8))
    return _round_up(tm, 8)


def mlp_pallas(x, w1, b1, w2, b2):
    """Fused fc1 -> exact GELU -> fc2. x: (..., d_in); returns (..., d_out)."""
    d_in = x.shape[-1]
    hidden = w1.shape[1]
    d_out = w2.shape[1]
    lead = x.shape[:-1]

    xf = x.reshape(-1, d_in)                       # lane-dense (M, d_in) slab
    m = xf.shape[0]
    tm = _pick_block_rows(m, d_in, hidden, d_out, jnp.dtype(x.dtype).itemsize)
    m_pad = _round_up(m, tm)
    if m_pad != m:
        xf = jnp.pad(xf, ((0, m_pad - m), (0, 0)))

    b1r = b1.reshape(1, hidden)
    b2r = b2.reshape(1, d_out)

    out = pl.pallas_call(
        _mlp_kernel,
        out_shape=jax.ShapeDtypeStruct((m_pad, d_out), x.dtype),
        grid=(m_pad // tm,),
        in_specs=[
            pl.BlockSpec((tm, d_in), lambda i: (i, 0)),       # row tile of tokens
            pl.BlockSpec((d_in, hidden), lambda i: (0, 0)),   # W1: resident in VMEM
            pl.BlockSpec((1, hidden), lambda i: (0, 0)),      # b1: resident
            pl.BlockSpec((hidden, d_out), lambda i: (0, 0)),  # W2: resident
            pl.BlockSpec((1, d_out), lambda i: (0, 0)),       # b2: resident
        ],
        out_specs=pl.BlockSpec((tm, d_out), lambda i: (i, 0)),
        compiler_params=pltpu.CompilerParams(
            dimension_semantics=("parallel",)),
    )(xf, w1, b1r, w2, b2r)

    if m_pad != m:
        out = out[:m]
    return out.reshape(lead + (d_out,))


class Mlp:
    """JAX/Pallas equivalent of the PyTorch Mlp module (fc1 -> GELU -> fc2 -> drop)."""

    def __init__(self, in_features, hidden_features=None, out_features=None,
                 drop=0.0, *, key, dtype=jnp.float32):
        out_features = out_features or in_features
        hidden_features = hidden_features or in_features
        k1, k2, k3, k4 = jax.random.split(key, 4)
        # PyTorch nn.Linear default init: U(-1/sqrt(fan_in), 1/sqrt(fan_in)).
        lim1 = 1.0 / math.sqrt(in_features)
        lim2 = 1.0 / math.sqrt(hidden_features)
        self.w1 = jax.random.uniform(k1, (in_features, hidden_features), dtype, -lim1, lim1)
        self.b1 = jax.random.uniform(k2, (hidden_features,), dtype, -lim1, lim1)
        self.w2 = jax.random.uniform(k3, (hidden_features, out_features), dtype, -lim2, lim2)
        self.b2 = jax.random.uniform(k4, (out_features,), dtype, -lim2, lim2)
        self.drop = float(drop)

    def __call__(self, x, *, training=False, rng=None):
        y = mlp_pallas(x, self.w1, self.b1, self.w2, self.b2)
        if self.drop > 0.0 and training:
            # TODO(synk): fuse dropout into the fc2 epilogue inside the kernel; the
            # module default (drop=0.0) is an identity, so it is applied here at the
            # JAX level only when explicitly requested.
            keep = 1.0 - self.drop
            mask = jax.random.bernoulli(rng, keep, y.shape)
            y = jnp.where(mask, y / keep, 0.0).astype(y.dtype)
        return y


def _mlp_ref(x, w1, b1, w2, b2):
    # Pure-JAX reference matching the PyTorch forward (exact erf GELU, drop=0.0).
    h = jnp.dot(x, w1, precision=jax.lax.Precision.HIGHEST) + b1
    h = jax.nn.gelu(h, approximate=False)
    return jnp.dot(h, w2, precision=jax.lax.Precision.HIGHEST) + b2


if __name__ == "__main__":
    key = jax.random.PRNGKey(0)
    k_params, k_x = jax.random.split(key)

    B, N, D_IN, D_HID = 2, 8, 32, 128       # small transformer-style shapes
    mlp = Mlp(D_IN, hidden_features=D_HID, key=k_params)
    x = jax.random.normal(k_x, (B, N, D_IN), dtype=jnp.float32)

    out = jax.block_until_ready(mlp(x))     # default: drop=0.0, eval-equivalent
    ref = _mlp_ref(x.reshape(-1, D_IN), mlp.w1, mlp.b1, mlp.w2, mlp.b2)
    ref = ref.reshape(B, N, D_IN)

    assert out.shape == (B, N, D_IN) and out.dtype == x.dtype
    max_err = float(jnp.max(jnp.abs(out - ref)))
    assert jnp.allclose(out, ref, atol=2e-5, rtol=2e-5), f"mismatch vs reference: {max_err}"

    print("KERNEL_OK")
</pallas_src>

<mosaic_0001>
module attributes {stable_mosaic.version = 11 : i64} {
  func.func @_mlp_kernel(%arg0: i32, %arg1: memref<16x32xf32, #tpu.memory_space<vmem>>, %arg2: memref<32x128xf32, #tpu.memory_space<vmem>>, %arg3: memref<1x128xf32, #tpu.memory_space<vmem>>, %arg4: memref<128x32xf32, #tpu.memory_space<vmem>>, %arg5: memref<1x32xf32, #tpu.memory_space<vmem>>, %arg6: memref<16x32xf32, #tpu.memory_space<vmem>>) attributes {dimension_semantics = [#tpu.dimension_semantics<parallel>], iteration_bounds = array<i64: 1>, scalar_prefetch = 0 : i64, scratch_operands = 0 : i64, tpu.core_type = #tpu.core_type<tc>, window_params = [{transform_indices = @transform_0, window_bounds = array<i64: 16, 32>}, {pipeline_mode = #tpu.pipeline_mode<synchronous>, transform_indices = @transform_1, window_bounds = array<i64: 32, 128>}, {pipeline_mode = #tpu.pipeline_mode<synchronous>, transform_indices = @transform_2, window_bounds = array<i64: 1, 128>}, {pipeline_mode = #tpu.pipeline_mode<synchronous>, transform_indices = @transform_3, window_bounds = array<i64: 128, 32>}, {pipeline_mode = #tpu.pipeline_mode<synchronous>, transform_indices = @transform_4, window_bounds = array<i64: 1, 32>}, {transform_indices = @transform_5, window_bounds = array<i64: 16, 32>}]} {
    %c0 = arith.constant 0 : index
    %c0_0 = arith.constant 0 : index
    %0 = vector.load %arg1[%c0, %c0_0] : memref<16x32xf32, #tpu.memory_space<vmem>>, vector<16x32xf32>
    %c0_1 = arith.constant 0 : index
    %c0_2 = arith.constant 0 : index
    %1 = vector.load %arg2[%c0_1, %c0_2] : memref<32x128xf32, #tpu.memory_space<vmem>>, vector<32x128xf32>
    %cst = arith.constant dense<0.000000e+00> : vector<16x128xf32>
    %2 = tpu.matmul %0, %1, %cst {dimension_numbers = #tpu.dot_dimension_numbers<[1], [0], [0], [1], [0, 0, 1, 1], [], []>, precision = #tpu.contract_precision<fp32>} : vector<16x32xf32>, vector<32x128xf32>, vector<16x128xf32> -> vector<16x128xf32>
    %c0_3 = arith.constant 0 : index
    %c0_4 = arith.constant 0 : index
    %3 = vector.load %arg3[%c0_3, %c0_4] : memref<1x128xf32, #tpu.memory_space<vmem>>, vector<1x128xf32>
    %4 = vector.broadcast %3 : vector<1x128xf32> to vector<16x128xf32>
    %5 = arith.addf %2, %4 : vector<16x128xf32>
    %cst_5 = arith.constant 5.000000e-01 : f32
    %6 = vector.broadcast %cst_5 : f32 to vector<16x128xf32>
    %7 = arith.mulf %6, %5 : vector<16x128xf32>
    %cst_6 = arith.constant 0.707106769 : f32
    %8 = vector.broadcast %cst_6 : f32 to vector<16x128xf32>
    %9 = arith.mulf %5, %8 : vector<16x128xf32>
    %10 = math.absf %9 : vector<16x128xf32>
    %cst_7 = arith.constant 0.327591091 : f32
    %11 = vector.broadcast %cst_7 : f32 to vector<16x128xf32>
    %12 = arith.mulf %11, %10 : vector<16x128xf32>
    %cst_8 = arith.constant 1.000000e+00 : f32
    %13 = vector.broadcast %cst_8 : f32 to vector<16x128xf32>
    %14 = arith.addf %13, %12 : vector<16x128xf32>
    %cst_9 = arith.constant 1.000000e+00 : f32
    %15 = vector.broadcast %cst_9 : f32 to vector<16x128xf32>
    %16 = arith.divf %15, %14 : vector<16x128xf32>
    %cst_10 = arith.constant 1.06140542 : f32
    %17 = vector.broadcast %cst_10 : f32 to vector<16x128xf32>
    %18 = arith.mulf %17, %16 : vector<16x128xf32>
    %cst_11 = arith.constant -1.45315206 : f32
    %19 = vector.broadcast %cst_11 : f32 to vector<16x128xf32>
    %20 = arith.addf %18, %19 : vector<16x128xf32>
    %21 = arith.mulf %20, %16 : vector<16x128xf32>
    %cst_12 = arith.constant 1.42141378 : f32
    %22 = vector.broadcast %cst_12 : f32 to vector<16x128xf32>
    %23 = arith.addf %21, %22 : vector<16x128xf32>
    %24 = arith.mulf %23, %16 : vector<16x128xf32>
    %cst_13 = arith.constant -0.284496725 : f32
    %25 = vector.broadcast %cst_13 : f32 to vector<16x128xf32>
    %26 = arith.addf %24, %25 : vector<16x128xf32>
    %27 = arith.mulf %26, %16 : vector<16x128xf32>
    %cst_14 = arith.constant 0.254829586 : f32
    %28 = vector.broadcast %cst_14 : f32 to vector<16x128xf32>
    %29 = arith.addf %27, %28 : vector<16x128xf32>
    %30 = arith.mulf %29, %16 : vector<16x128xf32>
    %31 = arith.mulf %10, %10 : vector<16x128xf32>
    %cst_15 = arith.constant 0.000000e+00 : f32
    %32 = vector.broadcast %cst_15 : f32 to vector<16x128xf32>
    %33 = arith.subf %32, %31 : vector<16x128xf32>
    %34 = math.exp %33 : vector<16x128xf32>
    %35 = arith.mulf %30, %34 : vector<16x128xf32>
    %cst_16 = arith.constant 1.000000e+00 : f32
    %36 = vector.broadcast %cst_16 : f32 to vector<16x128xf32>
    %37 = arith.subf %36, %35 : vector<16x128xf32>
    %cst_17 = arith.constant 0.000000e+00 : f32
    %38 = vector.broadcast %cst_17 : f32 to vector<16x128xf32>
    %39 = arith.cmpf oge, %9, %38 : vector<16x128xf32>
    %cst_18 = arith.constant 0.000000e+00 : f32
    %40 = vector.broadcast %cst_18 : f32 to vector<16x128xf32>
    %41 = arith.subf %40, %37 : vector<16x128xf32>
    %42 = arith.select %39, %37, %41 : vector<16x128xi1>, vector<16x128xf32>
    %cst_19 = arith.constant 1.000000e+00 : f32
    %43 = vector.broadcast %cst_19 : f32 to vector<16x128xf32>
    %44 = arith.addf %43, %42 : vector<16x128xf32>
    %45 = arith.mulf %7, %44 : vector<16x128xf32>
    %c0_20 = arith.constant 0 : index
    %c0_21 = arith.constant 0 : index
    %46 = vector.load %arg4[%c0_20, %c0_21] : memref<128x32xf32, #tpu.memory_space<vmem>>, vector<128x32xf32>
    %cst_22 = arith.constant dense<0.000000e+00> : vector<16x32xf32>
    %47 = tpu.matmul %45, %46, %cst_22 {dimension_numbers = #tpu.dot_dimension_numbers<[1], [0], [0], [1], [0, 0, 1, 1], [], []>, precision = #tpu.contract_precision<fp32>} : vector<16x128xf32>, vector<128x32xf32>, vector<16x32xf32> -> vector<16x32xf32>
    %c0_23 = arith.constant 0 : index
    %c0_24 = arith.constant 0 : index
    %48 = vector.load %arg5[%c0_23, %c0_24] : memref<1x32xf32, #tpu.memory_space<vmem>>, vector<1x32xf32>
    %49 = vector.broadcast %48 : vector<1x32xf32> to vector<16x32xf32>
    %50 = arith.addf %47, %49 : vector<16x32xf32>
    %c0_25 = arith.constant 0 : index
    %c0_26 = arith.constant 0 : index
    %51 = vector.load %arg6[%c0_25, %c0_26] : memref<16x32xf32, #tpu.memory_space<vmem>>, vector<16x32xf32>
    tpu.vector_store %arg6[%c0_25, %c0_26], %50 {strides = array<i32>} : memref<16x32xf32, #tpu.memory_space<vmem>>, vector<16x32xf32>,
    return
  }
  func.func @transform_0(%arg0: i32) -> (i32, i32) {
    %c0_i32 = arith.constant 0 : i32
    %c0_i32_0 = arith.constant 0 : i32
    return %arg0, %c0_i32 : i32, i32
  }
  func.func @transform_1(%arg0: i32) -> (i32, i32) {
    %c0_i32 = arith.constant 0 : i32
    %c0_i32_0 = arith.constant 0 : i32
    %c0_i32_1 = arith.constant 0 : i32
    return %c0_i32, %c0_i32_0 : i32, i32
  }
  func.func @transform_2(%arg0: i32) -> (i32, i32) {
    %c0_i32 = arith.constant 0 : i32
    %c0_i32_0 = arith.constant 0 : i32
    %c0_i32_1 = arith.constant 0 : i32
    return %c0_i32, %c0_i32_0 : i32, i32
  }
  func.func @transform_3(%arg0: i32) -> (i32, i32) {
    %c0_i32 = arith.constant 0 : i32
    %c0_i32_0 = arith.constant 0 : i32
    %c0_i32_1 = arith.constant 0 : i32
    return %c0_i32, %c0_i32_0 : i32, i32
  }
  func.func @transform_4(%arg0: i32) -> (i32, i32) {
    %c0_i32 = arith.constant 0 : i32
    %c0_i32_0 = arith.constant 0 : i32
    %c0_i32_1 = arith.constant 0 : i32
    return %c0_i32, %c0_i32_0 : i32, i32
  }
  func.func @transform_5(%arg0: i32) -> (i32, i32) {
    %c0_i32 = arith.constant 0 : i32
    %c0_i32_0 = arith.constant 0 : i32
    return %arg0, %c0_i32 : i32, i32
  }
}

</mosaic_0001>

<llo_original>
// kernel: tpu_custom_call.1
$region0: #{tpu_custom_call.1}
  #allocation0 [shape = 'u32[]', space=smem, size = 0x4, offset = 0x4, fixed_abs, tag = 'smem constant byte address 0x4 - core index']
  #allocation1 [shape = 'u32[144,128]{1,0:T(1,128)}', space=vmem, size = 0x12000, scoped, tag = 'internal scratch']
  %s0 = inlined_call_operand.vmem [shape: f32[16,32], index: 0, kind: input, shape index: {}]
  %s1 = inlined_call_operand.vmem [shape: f32[32,128], index: 1, kind: input, shape index: {}]
  %s2 = inlined_call_operand.vmem [shape: f32[1,128], index: 2, kind: input, shape index: {}]
  %s3 = inlined_call_operand.vmem [shape: f32[128,32], index: 3, kind: input, shape index: {}]
  %s4 = inlined_call_operand.vmem [shape: f32[1,32], index: 4, kind: input, shape index: {}]
  %s5 = inlined_call_operand.hbm [shape: f32[16,32], index: 5, kind: output, shape index: {}]
  %s6 = sld [smem:[#allocation0]]
  $region30: #{tpu_custom_call.1} parent=0
    _
  %s8 = ssub.s32 1, %s6
  %s9 = scalar_select 0, %s8, %s6
  $region1: #{tpu_custom_call.1} parent=0
    #allocation2 [shape = 'u8[8192]{0}', space=vmem, size = 0x2000, scoped, tag = 'output window, operand 0, single buffered']
    #allocation3 [shape = 's32[1]{0}', space=sflag, size = 0x4, scoped, tag = 'scoped memory for tpu_custom_call.1']
    %10 = vsyncpa [#allocation3], 0
    // Predicated region
    $region2: #{tpu_custom_call.1} parent=1 // pred_check
      _
    $region3: #{tpu_custom_call.1} parent=1 // pred_check_branch
      %12 = sbr.rel (0) target = $region5
    $region4: #{tpu_custom_call.1} parent=1 // pred_region
      _
    $region5: #{tpu_custom_call.1} parent=1 // pred_fallthru
      _
    // Predicated region
    $region6: #{tpu_custom_call.1} parent=1 // pred_check
      _
    $region7: #{tpu_custom_call.1} parent=1 // pred_check_branch
      %14 = sbr.rel (0) target = $region9
    $region8: #{tpu_custom_call.1} parent=1 // pred_region
      _
    $region9: #{tpu_custom_call.1} parent=1 // pred_fallthru
      _
    // Predicated region
    $region10: #{tpu_custom_call.1} parent=1 // pred_check
      _
    $region11: #{tpu_custom_call.1} parent=1 // pred_check_branch
      %16 = sbr.rel (0) target = $region13
    $region12: #{tpu_custom_call.1} parent=1 // pred_region
      _
    $region13: #{tpu_custom_call.1} parent=1 // pred_fallthru
      _
    // Predicated region
    $region14: #{tpu_custom_call.1} parent=1 // pred_check
      _
    $region15: #{tpu_custom_call.1} parent=1 // pred_check_branch
      %18 = sbr.rel (0) target = $region17
    $region16: #{tpu_custom_call.1} parent=1 // pred_region
      _
    $region17: #{tpu_custom_call.1} parent=1 // pred_fallthru
      _
    // Predicated region
    $region18: #{tpu_custom_call.1} parent=1 // pred_check
      _
    $region19: #{tpu_custom_call.1} parent=1 // pred_check_branch
      %20 = sbr.rel (0) target = $region21
    $region20: #{tpu_custom_call.1} parent=1 // pred_region
      _
    $region21: #{tpu_custom_call.1} parent=1 // pred_fallthru
      _
    %v21 = vld [vmem:[%s0] sm:$0xff]
    %v22 = vld [vmem:[%s0 + $0x8] sm:$0xff]
    %v23 = vld [vmem:[%s1] sm:$0xff]
    %v24 = vld [vmem:[%s1 + $0x8] sm:$0xff]
    %v25 = vld [vmem:[%s1 + $0x10] sm:$0xff]
    %v26 = vld [vmem:[%s1 + $0x18] sm:$0xff]
    %v27 = vld [vmem:[%s2] sm:$0x1]
    %v29 = vlaneseq
    %v30 = vshrl.u32 %v29, 7
    %v31 = vsub.s32 0, %v30
    %v32 = vrot.slane %v27, %v31
    %vm34 = vcmask 261120
    %v36 = vsel %vm34, %v21, 0
    %v39 = vsel %vm34, %v22, 0
    %41 = vmatprep.subr.mxu0 0.0
    %42 = vmatpush1.msra.mxu0 0.0
    %43 = vmatprep.subr.mxu0 0.0
    %44 = vmatpush1.msra.mxu0 0.0
    %45 = vmatprep.subr.mxu0 0.0
    %46 = vmatpush1.msra.mxu0 0.0
    %47 = vmatprep.subr.mxu0 0.0
    %48 = vmatpush1.msra.mxu0 0.0
    %49 = vmatprep.subr.mxu0 0.0
    %50 = vmatpush1.msra.mxu0 0.0
    %51 = vmatprep.subr.mxu0 0.0
    %52 = vmatpush1.msra.mxu0 0.0
    %53 = vmatprep.subr.mxu0 0.0
    %54 = vmatpush1.msra.mxu0 0.0
    %55 = vmatprep.subr.mxu0 0.0
    %56 = vmatpush1.msra.mxu0 0.0
    %57 = vmatprep.subr.mxu0 0.0
    %58 = vmatpush1.msra.mxu0 0.0
    %59 = vmatprep.subr.mxu0 0.0
    %60 = vmatpush1.msra.mxu0 0.0
    %61 = vmatprep.subr.mxu0 0.0
    %62 = vmatpush1.msra.mxu0 0.0
    %63 = vmatprep.subr.mxu0 0.0
    %64 = vmatpush1.msra.mxu0 0.0
    %65 = vmatprep.subr.mxu0 0.0
    %v66 = vand.u32 %v26, 4294901760
    %67 = vmatpush1.msra.mxu0 %v66
    %68 = vmatprep.subr.mxu0 0.0
    %v69 = vand.u32 %v25, 4294901760
    %70 = vmatpush1.msra.mxu0 %v69
    %71 = vmatprep.subr.mxu0 0.0
    %v72 = vand.u32 %v24, 4294901760
    %73 = vmatpush1.msra.mxu0 %v72
    %74 = vmatprep.subr.mxu0 0.0
    %v75 = vand.u32 %v23, 4294901760
    %76 = vmatpush1.msra.mxu0 %v75
    %77 = vmatprep.subr.mxu0 0.0
    %78 = vmatpush2.msra.mxu0 0.0
    %79 = vmatprep.subr.mxu0 0.0
    %80 = vmatpush2.msra.mxu0 0.0
    %81 = vmatprep.subr.mxu0 0.0
    %82 = vmatpush2.msra.mxu0 0.0
    %83 = vmatprep.subr.mxu0 0.0
    %84 = vmatpush2.msra.mxu0 0.0
    %85 = vmatprep.subr.mxu0 0.0
    %86 = vmatpush2.msra.mxu0 0.0
    %87 = vmatprep.subr.mxu0 0.0
    %88 = vmatpush2.msra.mxu0 0.0
    %89 = vmatprep.subr.mxu0 0.0
    %90 = vmatpush2.msra.mxu0 0.0
    %91 = vmatprep.subr.mxu0 0.0
    %92 = vmatpush2.msra.mxu0 0.0
    %93 = vmatprep.subr.mxu0 0.0
    %94 = vmatpush2.msra.mxu0 0.0
    %95 = vmatprep.subr.mxu0 0.0
    %96 = vmatpush2.msra.mxu0 0.0
    %97 = vmatprep.subr.mxu0 0.0
    %98 = vmatpush2.msra.mxu0 0.0
    %99 = vmatprep.subr.mxu0 0.0
    %100 = vmatpush2.msra.mxu0 0.0
    %101 = vmatprep.subr.mxu0 0.0
    %102 = vmatpush2.msra.mxu0 0.0
    %103 = vmatprep.subr.mxu0 0.0
    %104 = vmatpush2.msra.mxu0 0.0
    %105 = vmatprep.subr.mxu0 0.0
    %106 = vmatpush2.msra.mxu0 0.0
    %107 = vmatprep.subr.mxu0 0.0
    %108 = vmatpush2.msra.mxu0 0.0
    %109 = vmatprep.mubr.f32.mxu0 0.0
    %v110 = vand.u32 %v36, 4294901760
    %v111 = vsub.f32 %v36, %v110
    %v112 = vand.u32 %v111, 4294901760
    %v113 = vsub.f32 %v111, %v112
    %v114 = vand.u32 %v113, 4294901760
    %115 = vmatmul.mubr.f32.gmra.mxu0 %v114
    %v116 = vpop.f32.mrf.mxu0
    %v117 = vadd.f32 %v32, %v116
    %v118 = vpop.f32.mrf.mxu0
    %119 = vmatprep.mubr.f32.mxu0 0.0
    %v120 = vand.u32 %v39, 4294901760
    %v121 = vsub.f32 %v39, %v120
    %v122 = vand.u32 %v121, 4294901760
    %v123 = vsub.f32 %v121, %v122
    %v124 = vand.u32 %v123, 4294901760
    %125 = vmatmul.mubr.f32.gmra.mxu0 %v124
    %v126 = vpop.f32.mrf.mxu0
    %v127 = vadd.f32 %v32, %v126
    %v128 = vpop.f32.mrf.mxu0
    %129 = vdwg.mxu0
    %130 = vmatprep.subr.mxu0 0.0
    %131 = vmatpush1.msra.mxu0 0.0
    %132 = vmatprep.subr.mxu0 0.0
    %133 = vmatpush1.msra.mxu0 0.0
    %134 = vmatprep.subr.mxu0 0.0
    %135 = vmatpush1.msra.mxu0 0.0
    %136 = vmatprep.subr.mxu0 0.0
    %137 = vmatpush1.msra.mxu0 0.0
    %138 = vmatprep.subr.mxu0 0.0
    %139 = vmatpush1.msra.mxu0 0.0
    %140 = vmatprep.subr.mxu0 0.0
    %141 = vmatpush1.msra.mxu0 0.0
    %142 = vmatprep.subr.mxu0 0.0
    %143 = vmatpush1.msra.mxu0 0.0
    %144 = vmatprep.subr.mxu0 0.0
    %145 = vmatpush1.msra.mxu0 0.0
    %146 = vmatprep.subr.mxu0 0.0
    %147 = vmatpush1.msra.mxu0 0.0
    %148 = vmatprep.subr.mxu0 0.0
    %149 = vmatpush1.msra.mxu0 0.0
    %150 = vmatprep.subr.mxu0 0.0
    %151 = vmatpush1.msra.mxu0 0.0
    %152 = vmatprep.subr.mxu0 0.0
    %153 = vmatpush1.msra.mxu0 0.0
    %154 = vmatprep.subr.mxu0 0.0
    %v155 = vand.u32 %v26, 4294901760
    %v156 = vsub.f32 %v26, %v155
    %v157 = vand.u32 %v156, 4294901760
    %v158 = vsub.f32 %v156, %v157
    %v159 = vand.u32 %v158, 4294901760
    %160 = vmatpush1.msra.mxu0 %v159
    %161 = vmatprep.subr.mxu0 0.0
    %v162 = vand.u32 %v25, 4294901760
    %v163 = vsub.f32 %v25, %v162
    %v164 = vand.u32 %v163, 4294901760
    %v165 = vsub.f32 %v163, %v164
    %v166 = vand.u32 %v165, 4294901760
    %167 = vmatpush1.msra.mxu0 %v166
    %168 = vmatprep.subr.mxu0 0.0
    %v169 = vand.u32 %v24, 4294901760
    %v170 = vsub.f32 %v24, %v169
    %v171 = vand.u32 %v170, 4294901760
    %v172 = vsub.f32 %v170, %v171
    %v173 = vand.u32 %v172, 4294901760
    %174 = vmatpush1.msra.mxu0 %v173
    %175 = vmatprep.subr.mxu0 0.0
    %v176 = vand.u32 %v23, 4294901760
    %v177 = vsub.f32 %v23, %v176
    %v178 = vand.u32 %v177, 4294901760
    %v179 = vsub.f32 %v177, %v178
    %v180 = vand.u32 %v179, 4294901760
    %181 = vmatpush1.msra.mxu0 %v180
    %182 = vmatprep.subr.mxu0 0.0
    %183 = vmatpush2.msra.mxu0 0.0
    %184 = vmatprep.subr.mxu0 0.0
    %185 = vmatpush2.msra.mxu0 0.0
    %186 = vmatprep.subr.mxu0 0.0
    %187 = vmatpush2.msra.mxu0 0.0
    %188 = vmatprep.subr.mxu0 0.0
    %189 = vmatpush2.msra.mxu0 0.0
    %190 = vmatprep.subr.mxu0 0.0
    %191 = vmatpush2.msra.mxu0 0.0
    %192 = vmatprep.subr.mxu0 0.0
    %193 = vmatpush2.msra.mxu0 0.0
    %194 = vmatprep.subr.mxu0 0.0
    %195 = vmatpush2.msra.mxu0 0.0
    %196 = vmatprep.subr.mxu0 0.0
    %197 = vmatpush2.msra.mxu0 0.0
    %198 = vmatprep.subr.mxu0 0.0
    %199 = vmatpush2.msra.mxu0 0.0
    %200 = vmatprep.subr.mxu0 0.0
    %201 = vmatpush2.msra.mxu0 0.0
    %202 = vmatprep.subr.mxu0 0.0
    %203 = vmatpush2.msra.mxu0 0.0
    %204 = vmatprep.subr.mxu0 0.0
    %205 = vmatpush2.msra.mxu0 0.0
    %206 = vmatprep.subr.mxu0 0.0
    %207 = vmatpush2.msra.mxu0 0.0
    %208 = vmatprep.subr.mxu0 0.0
    %209 = vmatpush2.msra.mxu0 0.0
    %210 = vmatprep.subr.mxu0 0.0
    %211 = vmatpush2.msra.mxu0 0.0
    %212 = vmatprep.subr.mxu0 0.0
    %213 = vmatpush2.msra.mxu0 0.0
    %214 = vmatprep.mubr.f32.mxu0 0.0
    %v215 = vand.u32 %v36, 4294901760
    %216 = vmatmul.mubr.f32.gmra.mxu0 %v215
    %v217 = vpop.f32.mrf.mxu0
    %v218 = vadd.f32 %v117, %v217
    %v219 = vpop.f32.mrf.mxu0
    %220 = vmatprep.mubr.f32.mxu0 0.0
    %v221 = vand.u32 %v39, 4294901760
    %222 = vmatmul.mubr.f32.gmra.mxu0 %v221
    %v223 = vpop.f32.mrf.mxu0
    %v224 = vadd.f32 %v127, %v223
    %v225 = vpop.f32.mrf.mxu0
    %226 = vdwg.mxu0
    %227 = vmatprep.subr.mxu0 0.0
    %228 = vmatpush1.msra.mxu0 0.0
    %229 = vmatprep.subr.mxu0 0.0
    %230 = vmatpush1.msra.mxu0 0.0
    %231 = vmatprep.subr.mxu0 0.0
    %232 = vmatpush1.msra.mxu0 0.0
    %233 = vmatprep.subr.mxu0 0.0
    %234 = vmatpush1.msra.mxu0 0.0
    %235 = vmatprep.subr.mxu0 0.0
    %236 = vmatpush1.msra.mxu0 0.0
    %237 = vmatprep.subr.mxu0 0.0
    %238 = vmatpush1.msra.mxu0 0.0
    %239 = vmatprep.subr.mxu0 0.0
    %240 = vmatpush1.msra.mxu0 0.0
    %241 = vmatprep.subr.mxu0 0.0
    %242 = vmatpush1.msra.mxu0 0.0
    %243 = vmatprep.subr.mxu0 0.0
    %244 = vmatpush1.msra.mxu0 0.0
    %245 = vmatprep.subr.mxu0 0.0
    %246 = vmatpush1.msra.mxu0 0.0
    %247 = vmatprep.subr.mxu0 0.0
    %248 = vmatpush1.msra.mxu0 0.0
    %249 = vmatprep.subr.mxu0 0.0
    %250 = vmatpush1.msra.mxu0 0.0
    %251 = vmatprep.subr.mxu0 0.0
    %v252 = vand.u32 %v26, 4294901760
    %v253 = vsub.f32 %v26, %v252
    %254 = vmatpush1.msra.mxu0 %v253
    %255 = vmatprep.subr.mxu0 0.0
    %v256 = vand.u32 %v25, 4294901760
    %v257 = vsub.f32 %v25, %v256
    %258 = vmatpush1.msra.mxu0 %v257
    %259 = vmatprep.subr.mxu0 0.0
    %v260 = vand.u32 %v24, 4294901760
    %v261 = vsub.f32 %v24, %v260
    %262 = vmatpush1.msra.mxu0 %v261
    %263 = vmatprep.subr.mxu0 0.0
    %v264 = vand.u32 %v23, 4294901760
    %v265 = vsub.f32 %v23, %v264
    %266 = vmatpush1.msra.mxu0 %v265
    %267 = vmatprep.subr.mxu0 0.0
    %268 = vmatpush2.msra.mxu0 0.0
    %269 = vmatprep.subr.mxu0 0.0
    %270 = vmatpush2.msra.mxu0 0.0
    %271 = vmatprep.subr.mxu0 0.0
    %272 = vmatpush2.msra.mxu0 0.0
    %273 = vmatprep.subr.mxu0 0.0
    %274 = vmatpush2.msra.mxu0 0.0
    %275 = vmatprep.subr.mxu0 0.0
    %276 = vmatpush2.msra.mxu0 0.0
    %277 = vmatprep.subr.mxu0 0.0
    %278 = vmatpush2.msra.mxu0 0.0
    %279 = vmatprep.subr.mxu0 0.0
    %280 = vmatpush2.msra.mxu0 0.0
    %281 = vmatprep.subr.mxu0 0.0
    %282 = vmatpush2.msra.mxu0 0.0
    %283 = vmatprep.subr.mxu0 0.0
    %284 = vmatpush2.msra.mxu0 0.0
    %285 = vmatprep.subr.mxu0 0.0
    %286 = vmatpush2.msra.mxu0 0.0
    %287 = vmatprep.subr.mxu0 0.0
    %288 = vmatpush2.msra.mxu0 0.0
    %289 = vmatprep.subr.mxu0 0.0
    %290 = vmatpush2.msra.mxu0 0.0
    %291 = vmatprep.subr.mxu0 0.0
    %292 = vmatpush2.msra.mxu0 0.0
    %293 = vmatprep.subr.mxu0 0.0
    %294 = vmatpush2.msra.mxu0 0.0
    %295 = vmatprep.subr.mxu0 0.0
    %296 = vmatpush2.msra.mxu0 0.0
    %297 = vmatprep.subr.mxu0 0.0
    %298 = vmatpush2.msra.mxu0 0.0
    %299 = vmatprep.mubr.f32.mxu0 0.0
    %v300 = vand.u32 %v36, 4294901760
    %v301 = vsub.f32 %v36, %v300
    %302 = vmatmul.mubr.f32.gmra.mxu0 %v301
    %v303 = vpop.f32.mrf.mxu0
    %v304 = vadd.f32 %v218, %v303
    %v305 = vpop.f32.mrf.mxu0
    %306 = vmatprep.mubr.f32.mxu0 0.0
    %v307 = vand.u32 %v39, 4294901760
    %v308 = vsub.f32 %v39, %v307
    %309 = vmatmul.mubr.f32.gmra.mxu0 %v308
    %v310 = vpop.f32.mrf.mxu0
    %v311 = vadd.f32 %v224, %v310
    %v312 = vpop.f32.mrf.mxu0
    %313 = vdwg.mxu0
    %314 = vmatprep.subr.mxu0 0.0
    %315 = vmatpush1.msra.mxu0 0.0
    %316 = vmatprep.subr.mxu0 0.0
    %317 = vmatpush1.msra.mxu0 0.0
    %318 = vmatprep.subr.mxu0 0.0
    %319 = vmatpush1.msra.mxu0 0.0
    %320 = vmatprep.subr.mxu0 0.0
    %321 = vmatpush1.msra.mxu0 0.0
    %322 = vmatprep.subr.mxu0 0.0
    %323 = vmatpush1.msra.mxu0 0.0
    %324 = vmatprep.subr.mxu0 0.0
    %325 = vmatpush1.msra.mxu0 0.0
    %326 = vmatprep.subr.mxu0 0.0
    %327 = vmatpush1.msra.mxu0 0.0
    %328 = vmatprep.subr.mxu0 0.0
    %329 = vmatpush1.msra.mxu0 0.0
    %330 = vmatprep.subr.mxu0 0.0
    %331 = vmatpush1.msra.mxu0 0.0
    %332 = vmatprep.subr.mxu0 0.0
    %333 = vmatpush1.msra.mxu0 0.0
    %334 = vmatprep.subr.mxu0 0.0
    %335 = vmatpush1.msra.mxu0 0.0
    %336 = vmatprep.subr.mxu0 0.0
    %337 = vmatpush1.msra.mxu0 0.0
    %338 = vmatprep.subr.mxu0 0.0
    %v339 = vand.u32 %v26, 4294901760
    %340 = vmatpush1.msra.mxu0 %v339
    %341 = vmatprep.subr.mxu0 0.0
    %v342 = vand.u32 %v25, 4294901760
    %343 = vmatpush1.msra.mxu0 %v342
    %344 = vmatprep.subr.mxu0 0.0
    %v345 = vand.u32 %v24, 4294901760
    %346 = vmatpush1.msra.mxu0 %v345
    %347 = vmatprep.subr.mxu0 0.0
    %v348 = vand.u32 %v23, 4294901760
    %349 = vmatpush1.msra.mxu0 %v348
    %350 = vmatprep.subr.mxu0 0.0
    %351 = vmatpush2.msra.mxu0 0.0
    %352 = vmatprep.subr.mxu0 0.0
    %353 = vmatpush2.msra.mxu0 0.0
    %354 = vmatprep.subr.mxu0 0.0
    %355 = vmatpush2.msra.mxu0 0.0
    %356 = vmatprep.subr.mxu0 0.0
    %357 = vmatpush2.msra.mxu0 0.0
    %358 = vmatprep.subr.mxu0 0.0
    %359 = vmatpush2.msra.mxu0 0.0
    %360 = vmatprep.subr.mxu0 0.0
    %361 = vmatpush2.msra.mxu0 0.0
    %362 = vmatprep.subr.mxu0 0.0
    %363 = vmatpush2.msra.mxu0 0.0
    %364 = vmatprep.subr.mxu0 0.0
    %365 = vmatpush2.msra.mxu0 0.0
    %366 = vmatprep.subr.mxu0 0.0
    %367 = vmatpush2.msra.mxu0 0.0
    %368 = vmatprep.subr.mxu0 0.0
    %369 = vmatpush2.msra.mxu0 0.0
    %370 = vmatprep.subr.mxu0 0.0
    %371 = vmatpush2.msra.mxu0 0.0
    %372 = vmatprep.subr.mxu0 0.0
    %373 = vmatpush2.msra.mxu0 0.0
    %374 = vmatprep.subr.mxu0 0.0
    %375 = vmatpush2.msra.mxu0 0.0
    %376 = vmatprep.subr.mxu0 0.0
    %377 = vmatpush2.msra.mxu0 0.0
    %378 = vmatprep.subr.mxu0 0.0
    %379 = vmatpush2.msra.mxu0 0.0
    %380 = vmatprep.subr.mxu0 0.0
    %381 = vmatpush2.msra.mxu0 0.0
    %382 = vmatprep.mubr.f32.mxu0 0.0
    %v383 = vand.u32 %v36, 4294901760
    %v384 = vsub.f32 %v36, %v383
    %v385 = vand.u32 %v384, 4294901760
    %386 = vmatmul.mubr.f32.gmra.mxu0 %v385
    %v387 = vpop.f32.mrf.mxu0
    %v388 = vadd.f32 %v304, %v387
    %v389 = vpop.f32.mrf.mxu0
    %390 = vmatprep.mubr.f32.mxu0 0.0
    %v391 = vand.u32 %v39, 4294901760
    %v392 = vsub.f32 %v39, %v391
    %v393 = vand.u32 %v392, 4294901760
    %394 = vmatmul.mubr.f32.gmra.mxu0 %v393
    %v395 = vpop.f32.mrf.mxu0
    %v396 = vadd.f32 %v311, %v395
    %v397 = vpop.f32.mrf.mxu0
    %398 = vdwg.mxu0
    %399 = vmatprep.subr.mxu0 0.0
    %400 = vmatpush1.msra.mxu0 0.0
    %401 = vmatprep.subr.mxu0 0.0
    %402 = vmatpush1.msra.mxu0 0.0
    %403 = vmatprep.subr.mxu0 0.0
    %404 = vmatpush1.msra.mxu0 0.0
    %405 = vmatprep.subr.mxu0 0.0
    %406 = vmatpush1.msra.mxu0 0.0
    %407 = vmatprep.subr.mxu0 0.0
    %408 = vmatpush1.msra.mxu0 0.0
    %409 = vmatprep.subr.mxu0 0.0
    %410 = vmatpush1.msra.mxu0 0.0
    %411 = vmatprep.subr.mxu0 0.0
    %412 = vmatpush1.msra.mxu0 0.0
    %413 = vmatprep.subr.mxu0 0.0
    %414 = vmatpush1.msra.mxu0 0.0
    %415 = vmatprep.subr.mxu0 0.0
    %416 = vmatpush1.msra.mxu0 0.0
    %417 = vmatprep.subr.mxu0 0.0
    %418 = vmatpush1.msra.mxu0 0.0
    %419 = vmatprep.subr.mxu0 0.0
    %420 = vmatpush1.msra.mxu0 0.0
    %421 = vmatprep.subr.mxu0 0.0
    %422 = vmatpush1.msra.mxu0 0.0
    %423 = vmatprep.subr.mxu0 0.0
    %v424 = vand.u32 %v26, 4294901760
    %v425 = vsub.f32 %v26, %v424
    %v426 = vand.u32 %v425, 4294901760
    %427 = vmatpush1.msra.mxu0 %v426
    %428 = vmatprep.subr.mxu0 0.0
    %v429 = vand.u32 %v25, 4294901760
    %v430 = vsub.f32 %v25, %v429
    %v431 = vand.u32 %v430, 4294901760
    %432 = vmatpush1.msra.mxu0 %v431
    %433 = vmatprep.subr.mxu0 0.0
    %v434 = vand.u32 %v24, 4294901760
    %v435 = vsub.f32 %v24, %v434
    %v436 = vand.u32 %v435, 4294901760
    %437 = vmatpush1.msra.mxu0 %v436
    %438 = vmatprep.subr.mxu0 0.0
    %v439 = vand.u32 %v23, 4294901760
    %v440 = vsub.f32 %v23, %v439
    %v441 = vand.u32 %v440, 4294901760
    %442 = vmatpush1.msra.mxu0 %v441
    %443 = vmatprep.subr.mxu0 0.0
    %444 = vmatpush2.msra.mxu0 0.0
    %445 = vmatprep.subr.mxu0 0.0
    %446 = vmatpush2.msra.mxu0 0.0
    %447 = vmatprep.subr.mxu0 0.0
    %448 = vmatpush2.msra.mxu0 0.0
    %449 = vmatprep.subr.mxu0 0.0
    %450 = vmatpush2.msra.mxu0 0.0
    %451 = vmatprep.subr.mxu0 0.0
    %452 = vmatpush2.msra.mxu0 0.0
    %453 = vmatprep.subr.mxu0 0.0
    %454 = vmatpush2.msra.mxu0 0.0
    %455 = vmatprep.subr.mxu0 0.0
    %456 = vmatpush2.msra.mxu0 0.0
    %457 = vmatprep.subr.mxu0 0.0
    %458 = vmatpush2.msra.mxu0 0.0
    %459 = vmatprep.subr.mxu0 0.0
    %460 = vmatpush2.msra.mxu0 0.0
    %461 = vmatprep.subr.mxu0 0.0
    %462 = vmatpush2.msra.mxu0 0.0
    %463 = vmatprep.subr.mxu0 0.0
    %464 = vmatpush2.msra.mxu0 0.0
    %465 = vmatprep.subr.mxu0 0.0
    %466 = vmatpush2.msra.mxu0 0.0
    %467 = vmatprep.subr.mxu0 0.0
    %468 = vmatpush2.msra.mxu0 0.0
    %469 = vmatprep.subr.mxu0 0.0
    %470 = vmatpush2.msra.mxu0 0.0
    %471 = vmatprep.subr.mxu0 0.0
    %472 = vmatpush2.msra.mxu0 0.0
    %473 = vmatprep.subr.mxu0 0.0
    %474 = vmatpush2.msra.mxu0 0.0
    %475 = vmatprep.mubr.f32.mxu0 0.0
    %v476 = vand.u32 %v36, 4294901760
    %477 = vmatmul.mubr.f32.gmra.mxu0 %v476
    %v478 = vpop.f32.mrf.mxu0
    %v479 = vadd.f32 %v388, %v478
    %v480 = vpop.f32.mrf.mxu0
    %481 = vmatprep.mubr.f32.mxu0 0.0
    %v482 = vand.u32 %v39, 4294901760
    %483 = vmatmul.mubr.f32.gmra.mxu0 %v482
    %v484 = vpop.f32.mrf.mxu0
    %v485 = vadd.f32 %v396, %v484
    %v486 = vpop.f32.mrf.mxu0
    %487 = vdwg.mxu0
    %488 = vmatprep.subr.mxu0 0.0
    %489 = vmatpush1.msra.mxu0 0.0
    %490 = vmatprep.subr.mxu0 0.0
    %491 = vmatpush1.msra.mxu0 0.0
    %492 = vmatprep.subr.mxu0 0.0
    %493 = vmatpush1.msra.mxu0 0.0
    %494 = vmatprep.subr.mxu0 0.0
    %495 = vmatpush1.msra.mxu0 0.0
    %496 = vmatprep.subr.mxu0 0.0
    %497 = vmatpush1.msra.mxu0 0.0
    %498 = vmatprep.subr.mxu0 0.0
    %499 = vmatpush1.msra.mxu0 0.0
    %500 = vmatprep.subr.mxu0 0.0
    %501 = vmatpush1.msra.mxu0 0.0
    %502 = vmatprep.subr.mxu0 0.0
    %503 = vmatpush1.msra.mxu0 0.0
    %504 = vmatprep.subr.mxu0 0.0
    %505 = vmatpush1.msra.mxu0 0.0
    %506 = vmatprep.subr.mxu0 0.0
    %507 = vmatpush1.msra.mxu0 0.0
    %508 = vmatprep.subr.mxu0 0.0
    %509 = vmatpush1.msra.mxu0 0.0
    %510 = vmatprep.subr.mxu0 0.0
    %511 = vmatpush1.msra.mxu0 0.0
    %512 = vmatprep.subr.mxu0 0.0
    %v513 = vand.u32 %v26, 4294901760
    %514 = vmatpush1.msra.mxu0 %v513
    %515 = vmatprep.subr.mxu0 0.0
    %v516 = vand.u32 %v25, 4294901760
    %517 = vmatpush1.msra.mxu0 %v516
    %518 = vmatprep.subr.mxu0 0.0
    %v519 = vand.u32 %v24, 4294901760
    %520 = vmatpush1.msra.mxu0 %v519
    %521 = vmatprep.subr.mxu0 0.0
    %v522 = vand.u32 %v23, 4294901760
    %523 = vmatpush1.msra.mxu0 %v522
    %524 = vmatprep.subr.mxu0 0.0
    %525 = vmatpush2.msra.mxu0 0.0
    %526 = vmatprep.subr.mxu0 0.0
    %527 = vmatpush2.msra.mxu0 0.0
    %528 = vmatprep.subr.mxu0 0.0
    %529 = vmatpush2.msra.mxu0 0.0
    %530 = vmatprep.subr.mxu0 0.0
    %531 = vmatpush2.msra.mxu0 0.0
    %532 = vmatprep.subr.mxu0 0.0
    %533 = vmatpush2.msra.mxu0 0.0
    %534 = vmatprep.subr.mxu0 0.0
    %535 = vmatpush2.msra.mxu0 0.0
    %536 = vmatprep.subr.mxu0 0.0
    %537 = vmatpush2.msra.mxu0 0.0
    %538 = vmatprep.subr.mxu0 0.0
    %539 = vmatpush2.msra.mxu0 0.0
    %540 = vmatprep.subr.mxu0 0.0
    %541 = vmatpush2.msra.mxu0 0.0
    %542 = vmatprep.subr.mxu0 0.0
    %543 = vmatpush2.msra.mxu0 0.0
    %544 = vmatprep.subr.mxu0 0.0
    %545 = vmatpush2.msra.mxu0 0.0
    %546 = vmatprep.subr.mxu0 0.0
    %547 = vmatpush2.msra.mxu0 0.0
    %548 = vmatprep.subr.mxu0 0.0
    %549 = vmatpush2.msra.mxu0 0.0
    %550 = vmatprep.subr.mxu0 0.0
    %551 = vmatpush2.msra.mxu0 0.0
    %552 = vmatprep.subr.mxu0 0.0
    %553 = vmatpush2.msra.mxu0 0.0
    %554 = vmatprep.subr.mxu0 0.0
    %555 = vmatpush2.msra.mxu0 0.0
    %556 = vmatprep.mubr.f32.mxu0 0.0
    %v557 = vand.u32 %v36, 4294901760
    %558 = vmatmul.mubr.f32.gmra.mxu0 %v557
    %v559 = vpop.f32.mrf.mxu0
    %v560 = vadd.f32 %v479, %v559
    %v561 = vpop.f32.mrf.mxu0
    %562 = vmatprep.mubr.f32.mxu0 0.0
    %v563 = vand.u32 %v39, 4294901760
    %564 = vmatmul.mubr.f32.gmra.mxu0 %v563
    %v565 = vpop.f32.mrf.mxu0
    %v566 = vadd.f32 %v485, %v565
    %v567 = vpop.f32.mrf.mxu0
    %568 = vdwg.mxu0
    %v569 = vmul.f32 %v560, 0.5
    %v570 = vmul.f32 %v566, 0.5
    %v571 = vmul.f32 %v560, 0.70710677
    %v572 = vmul.f32 %v566, 0.70710677
    %v573 = vand.u32 2147483647, %v571
    %v574 = vand.u32 2147483647, %v572
    %v575 = vmul.f32 %v573, 0.3275911
    %v576 = vmul.f32 %v574, 0.3275911
    %v577 = vadd.f32 %v575, 1.0
    %v578 = vadd.f32 %v576, 1.0
    %v579 = vrcp.pop %v577
    %v580 = vmul.f32 1.0, %v579
    %v581 = vrcp.pop %v578
    %v582 = vmul.f32 1.0, %v581
    %v583 = vmul.f32 %v580, 1.0614054
    %v584 = vmul.f32 %v582, 1.0614054
    %v585 = vadd.f32 %v583, -1.4531521
    %v586 = vadd.f32 %v584, -1.4531521
    %v587 = vmul.f32 %v585, %v580
    %v588 = vmul.f32 %v586, %v582
    %v589 = vadd.f32 %v587, 1.4214138
    %v590 = vadd.f32 %v588, 1.4214138
    %v591 = vmul.f32 %v589, %v580
    %v592 = vmul.f32 %v590, %v582
    %v593 = vadd.f32 %v591, -0.28449672
    %v594 = vadd.f32 %v592, -0.28449672
    %v595 = vmul.f32 %v593, %v580
    %v596 = vmul.f32 %v594, %v582
    %v597 = vadd.f32 %v595, 0.2548296
    %v598 = vadd.f32 %v596, 0.2548296
    %v599 = vmul.f32 %v597, %v580
    %v600 = vmul.f32 %v598, %v582
    %v601 = vmul.f32 %v573, %v573
    %v602 = vmul.f32 %v574, %v574
    %v603 = vsub.f32 0.0, %v601
    %v604 = vsub.f32 0.0, %v602
    %v605 = vmul.f32 %v603, 1.442695
    %v606 = vpow.pop %v605
    %v607 = vmul.f32 %v604, 1.442695
    %v608 = vpow.pop %v607
    %v609 = vmul.f32 %v599, %v606
    %v610 = vmul.f32 %v600, %v608
    %v611 = vsub.f32 1.0, %v609
    %v612 = vsub.f32 1.0, %v610
    %vm613 = vcmp.ge.f32.partialorder %v571, 0.0
    %vm614 = vcmp.ge.f32.partialorder %v572, 0.0
    %v615 = vsub.f32 0.0, %v611
    %v616 = vsub.f32 0.0, %v612
    %v617 = vsel %vm613, %v611, %v615
    %v618 = vsel %vm614, %v612, %v616
    %v619 = vadd.f32 %v617, 1.0
    %v620 = vadd.f32 %v618, 1.0
    %v621 = vmul.f32 %v569, %v619
    %v622 = vmul.f32 %v570, %v620
    %v623 = vld [vmem:[%s3] sm:$0xff]
    %v624 = vld [vmem:[%s3 + $0x8] sm:$0xff]
    %v625 = vld [vmem:[%s3 + $0x10] sm:$0xff]
    %v626 = vld [vmem:[%s3 + $0x18] sm:$0xff]
    %v627 = vld [vmem:[%s3 + $0x20] sm:$0xff]
    %v628 = vld [vmem:[%s3 + $0x28] sm:$0xff]
    %v629 = vld [vmem:[%s3 + $0x30] sm:$0xff]
    %v630 = vld [vmem:[%s3 + $0x38] sm:$0xff]
    %v631 = vld [vmem:[%s3 + $0x40] sm:$0xff]
    %v632 = vld [vmem:[%s3 + $0x48] sm:$0xff]
    %v633 = vld [vmem:[%s3 + $0x50] sm:$0xff]
    %v634 = vld [vmem:[%s3 + $0x58] sm:$0xff]
    %v635 = vld [vmem:[%s3 + $0x60] sm:$0xff]
    %v636 = vld [vmem:[%s3 + $0x68] sm:$0xff]
    %v637 = vld [vmem:[%s3 + $0x70] sm:$0xff]
    %v638 = vld [vmem:[%s3 + $0x78] sm:$0xff]
    %v639 = vld [vmem:[%s4] sm:$0x1]
    %v641 = vlaneseq
    %v642 = vshrl.u32 %v641, 7
    %v643 = vsub.s32 0, %v642
    %v644 = vrot.slane %v639, %v643
    %646 = vmatprep.subr.mxu0 0.0
    %v647 = vand.u32 %v638, 4294901760
    %648 = vmatpush1.msra.mxu0 %v647
    %649 = vmatprep.subr.mxu0 0.0
    %v650 = vand.u32 %v637, 4294901760
    %651 = vmatpush1.msra.mxu0 %v650
    %652 = vmatprep.subr.mxu0 0.0
    %v653 = vand.u32 %v636, 4294901760
    %654 = vmatpush1.msra.mxu0 %v653
    %655 = vmatprep.subr.mxu0 0.0
    %v656 = vand.u32 %v635, 4294901760
    %657 = vmatpush1.msra.mxu0 %v656
    %658 = vmatprep.subr.mxu0 0.0
    %v659 = vand.u32 %v634, 4294901760
    %660 = vmatpush1.msra.mxu0 %v659
    %661 = vmatprep.subr.mxu0 0.0
    %v662 = vand.u32 %v633, 4294901760
    %663 = vmatpush1.msra.mxu0 %v662
    %664 = vmatprep.subr.mxu0 0.0
    %v665 = vand.u32 %v632, 4294901760
    %666 = vmatpush1.msra.mxu0 %v665
    %667 = vmatprep.subr.mxu0 0.0
    %v668 = vand.u32 %v631, 4294901760
    %669 = vmatpush1.msra.mxu0 %v668
    %670 = vmatprep.subr.mxu0 0.0
    %v671 = vand.u32 %v630, 4294901760
    %672 = vmatpush1.msra.mxu0 %v671
    %673 = vmatprep.subr.mxu0 0.0
    %v674 = vand.u32 %v629, 4294901760
    %675 = vmatpush1.msra.mxu0 %v674
    %676 = vmatprep.subr.mxu0 0.0
    %v677 = vand.u32 %v628, 4294901760
    %678 = vmatpush1.msra.mxu0 %v677
    %679 = vmatprep.subr.mxu0 0.0
    %v680 = vand.u32 %v627, 4294901760
    %681 = vmatpush1.msra.mxu0 %v680
    %682 = vmatprep.subr.mxu0 0.0
    %v683 = vand.u32 %v626, 4294901760
    %684 = vmatpush1.msra.mxu0 %v683
    %685 = vmatprep.subr.mxu0 0.0
    %v686 = vand.u32 %v625, 4294901760
    %687 = vmatpush1.msra.mxu0 %v686
    %688 = vmatprep.subr.mxu0 0.0
    %v689 = vand.u32 %v624, 4294901760
    %690 = vmatpush1.msra.mxu0 %v689
    %691 = vmatprep.subr.mxu0 0.0
    %v692 = vand.u32 %v623, 4294901760
    %693 = vmatpush1.msra.mxu0 %v692
    %694 = vmatprep.subr.mxu0 0.0
    %695 = vmatpush2.msra.mxu0 0.0
    %696 = vmatprep.subr.mxu0 0.0
    %697 = vmatpush2.msra.mxu0 0.0
    %698 = vmatprep.subr.mxu0 0.0
    %699 = vmatpush2.msra.mxu0 0.0
    %700 = vmatprep.subr.mxu0 0.0
    %701 = vmatpush2.msra.mxu0 0.0
    %702 = vmatprep.subr.mxu0 0.0
    %703 = vmatpush2.msra.mxu0 0.0
    %704 = vmatprep.subr.mxu0 0.0
    %705 = vmatpush2.msra.mxu0 0.0
    %706 = vmatprep.subr.mxu0 0.0
    %707 = vmatpush2.msra.mxu0 0.0
    %708 = vmatprep.subr.mxu0 0.0
    %709 = vmatpush2.msra.mxu0 0.0
    %710 = vmatprep.subr.mxu0 0.0
    %711 = vmatpush2.msra.mxu0 0.0
    %712 = vmatprep.subr.mxu0 0.0
    %713 = vmatpush2.msra.mxu0 0.0
    %714 = vmatprep.subr.mxu0 0.0
    %715 = vmatpush2.msra.mxu0 0.0
    %716 = vmatprep.subr.mxu0 0.0
    %717 = vmatpush2.msra.mxu0 0.0
    %718 = vmatprep.subr.mxu0 0.0
    %719 = vmatpush2.msra.mxu0 0.0
    %720 = vmatprep.subr.mxu0 0.0
    %721 = vmatpush2.msra.mxu0 0.0
    %722 = vmatprep.subr.mxu0 0.0
    %723 = vmatpush2.msra.mxu0 0.0
    %724 = vmatprep.subr.mxu0 0.0
    %725 = vmatpush2.msra.mxu0 0.0
    %726 = vmatprep.mubr.f32.mxu0 0.0
    %v727 = vand.u32 %v621, 4294901760
    %v728 = vsub.f32 %v621, %v727
    %v729 = vand.u32 %v728, 4294901760
    %v730 = vsub.f32 %v728, %v729
    %v731 = vand.u32 %v730, 4294901760
    %732 = vmatmul.mubr.f32.gmra.mxu0 %v731
    %v733 = vpop.f32.mrf.mxu0
    %v734 = vadd.f32 %v644, %v733
    %v735 = vpop.f32.mrf.mxu0
    %736 = vmatprep.mubr.f32.mxu0 0.0
    %v737 = vand.u32 %v622, 4294901760
    %v738 = vsub.f32 %v622, %v737
    %v739 = vand.u32 %v738, 4294901760
    %v740 = vsub.f32 %v738, %v739
    %v741 = vand.u32 %v740, 4294901760
    %742 = vmatmul.mubr.f32.gmra.mxu0 %v741
    %v743 = vpop.f32.mrf.mxu0
    %v744 = vadd.f32 %v644, %v743
    %v745 = vpop.f32.mrf.mxu0
    %746 = vdwg.mxu0
    %747 = vmatprep.subr.mxu0 0.0
    %v748 = vand.u32 %v638, 4294901760
    %v749 = vsub.f32 %v638, %v748
    %v750 = vand.u32 %v749, 4294901760
    %v751 = vsub.f32 %v749, %v750
    %v752 = vand.u32 %v751, 4294901760
    %753 = vmatpush1.msra.mxu0 %v752
    %754 = vmatprep.subr.mxu0 0.0
    %v755 = vand.u32 %v637, 4294901760
    %v756 = vsub.f32 %v637, %v755
    %v757 = vand.u32 %v756, 4294901760
    %v758 = vsub.f32 %v756, %v757
    %v759 = vand.u32 %v758, 4294901760
    %760 = vmatpush1.msra.mxu0 %v759
    %761 = vmatprep.subr.mxu0 0.0
    %v762 = vand.u32 %v636, 4294901760
    %v763 = vsub.f32 %v636, %v762
    %v764 = vand.u32 %v763, 4294901760
    %v765 = vsub.f32 %v763, %v764
    %v766 = vand.u32 %v765, 4294901760
    %767 = vmatpush1.msra.mxu0 %v766
    %768 = vmatprep.subr.mxu0 0.0
    %v769 = vand.u32 %v635, 4294901760
    %v770 = vsub.f32 %v635, %v769
    %v771 = vand.u32 %v770, 4294901760
    %v772 = vsub.f32 %v770, %v771
    %v773 = vand.u32 %v772, 4294901760
    %774 = vmatpush1.msra.mxu0 %v773
    %775 = vmatprep.subr.mxu0 0.0
    %v776 = vand.u32 %v634, 4294901760
    %v777 = vsub.f32 %v634, %v776
    %v778 = vand.u32 %v777, 4294901760
    %v779 = vsub.f32 %v777, %v778
    %v780 = vand.u32 %v779, 4294901760
    %781 = vmatpush1.msra.mxu0 %v780
    %782 = vmatprep.subr.mxu0 0.0
    %v783 = vand.u32 %v633, 4294901760
    %v784 = vsub.f32 %v633, %v783
    %v785 = vand.u32 %v784, 4294901760
    %v786 = vsub.f32 %v784, %v785
    %v787 = vand.u32 %v786, 4294901760
    %788 = vmatpush1.msra.mxu0 %v787
    %789 = vmatprep.subr.mxu0 0.0
    %v790 = vand.u32 %v632, 4294901760
    %v791 = vsub.f32 %v632, %v790
    %v792 = vand.u32 %v791, 4294901760
    %v793 = vsub.f32 %v791, %v792
    %v794 = vand.u32 %v793, 4294901760
    %795 = vmatpush1.msra.mxu0 %v794
    %796 = vmatprep.subr.mxu0 0.0
    %v797 = vand.u32 %v631, 4294901760
    %v798 = vsub.f32 %v631, %v797
    %v799 = vand.u32 %v798, 4294901760
    %v800 = vsub.f32 %v798, %v799
    %v801 = vand.u32 %v800, 4294901760
    %802 = vmatpush1.msra.mxu0 %v801
    %803 = vmatprep.subr.mxu0 0.0
    %v804 = vand.u32 %v630, 4294901760
    %v805 = vsub.f32 %v630, %v804
    %v806 = vand.u32 %v805, 4294901760
    %v807 = vsub.f32 %v805, %v806
    %v808 = vand.u32 %v807, 4294901760
    %809 = vmatpush1.msra.mxu0 %v808
    %810 = vmatprep.subr.mxu0 0.0
    %v811 = vand.u32 %v629, 4294901760
    %v812 = vsub.f32 %v629, %v811
    %v813 = vand.u32 %v812, 4294901760
    %v814 = vsub.f32 %v812, %v813
    %v815 = vand.u32 %v814, 4294901760
    %816 = vmatpush1.msra.mxu0 %v815
    %817 = vmatprep.subr.mxu0 0.0
    %v818 = vand.u32 %v628, 4294901760
    %v819 = vsub.f32 %v628, %v818
    %v820 = vand.u32 %v819, 4294901760
    %v821 = vsub.f32 %v819, %v820
    %v822 = vand.u32 %v821, 4294901760
    %823 = vmatpush1.msra.mxu0 %v822
    %824 = vmatprep.subr.mxu0 0.0
    %v825 = vand.u32 %v627, 4294901760
    %v826 = vsub.f32 %v627, %v825
    %v827 = vand.u32 %v826, 4294901760
    %v828 = vsub.f32 %v826, %v827
    %v829 = vand.u32 %v828, 4294901760
    %830 = vmatpush1.msra.mxu0 %v829
    %831 = vmatprep.subr.mxu0 0.0
    %v832 = vand.u32 %v626, 4294901760
    %v833 = vsub.f32 %v626, %v832
    %v834 = vand.u32 %v833, 4294901760
    %v835 = vsub.f32 %v833, %v834
    %v836 = vand.u32 %v835, 4294901760
    %837 = vmatpush1.msra.mxu0 %v836
    %838 = vmatprep.subr.mxu0 0.0
    %v839 = vand.u32 %v625, 4294901760
    %v840 = vsub.f32 %v625, %v839
    %v841 = vand.u32 %v840, 4294901760
    %v842 = vsub.f32 %v840, %v841
    %v843 = vand.u32 %v842, 4294901760
    %844 = vmatpush1.msra.mxu0 %v843
    %845 = vmatprep.subr.mxu0 0.0
    %v846 = vand.u32 %v624, 4294901760
    %v847 = vsub.f32 %v624, %v846
    %v848 = vand.u32 %v847, 4294901760
    %v849 = vsub.f32 %v847, %v848
    %v850 = vand.u32 %v849, 4294901760
    %851 = vmatpush1.msra.mxu0 %v850
    %852 = vmatprep.subr.mxu0 0.0
    %v853 = vand.u32 %v623, 4294901760
    %v854 = vsub.f32 %v623, %v853
    %v855 = vand.u32 %v854, 4294901760
    %v856 = vsub.f32 %v854, %v855
    %v857 = vand.u32 %v856, 4294901760
    %858 = vmatpush1.msra.mxu0 %v857
    %859 = vmatprep.subr.mxu0 0.0
    %860 = vmatpush2.msra.mxu0 0.0
    %861 = vmatprep.subr.mxu0 0.0
    %862 = vmatpush2.msra.mxu0 0.0
    %863 = vmatprep.subr.mxu0 0.0
    %864 = vmatpush2.msra.mxu0 0.0
    %865 = vmatprep.subr.mxu0 0.0
    %866 = vmatpush2.msra.mxu0 0.0
    %867 = vmatprep.subr.mxu0 0.0
    %868 = vmatpush2.msra.mxu0 0.0
    %869 = vmatprep.subr.mxu0 0.0
    %870 = vmatpush2.msra.mxu0 0.0
    %871 = vmatprep.subr.mxu0 0.0
    %872 = vmatpush2.msra.mxu0 0.0
    %873 = vmatprep.subr.mxu0 0.0
    %874 = vmatpush2.msra.mxu0 0.0
    %875 = vmatprep.subr.mxu0 0.0
    %876 = vmatpush2.msra.mxu0 0.0
    %877 = vmatprep.subr.mxu0 0.0
    %878 = vmatpush2.msra.mxu0 0.0
    %879 = vmatprep.subr.mxu0 0.0
    %880 = vmatpush2.msra.mxu0 0.0
    %881 = vmatprep.subr.mxu0 0.0
    %882 = vmatpush2.msra.mxu0 0.0
    %883 = vmatprep.subr.mxu0 0.0
    %884 = vmatpush2.msra.mxu0 0.0
    %885 = vmatprep.subr.mxu0 0.0
    %886 = vmatpush2.msra.mxu0 0.0
    %887 = vmatprep.subr.mxu0 0.0
    %888 = vmatpush2.msra.mxu0 0.0
    %889 = vmatprep.subr.mxu0 0.0
    %890 = vmatpush2.msra.mxu0 0.0
    %891 = vmatprep.mubr.f32.mxu0 0.0
    %v892 = vand.u32 %v621, 4294901760
    %893 = vmatmul.mubr.f32.gmra.mxu0 %v892
    %v894 = vpop.f32.mrf.mxu0
    %v895 = vadd.f32 %v734, %v894
    %v896 = vpop.f32.mrf.mxu0
    %897 = vmatprep.mubr.f32.mxu0 0.0
    %v898 = vand.u32 %v622, 4294901760
    %899 = vmatmul.mubr.f32.gmra.mxu0 %v898
    %v900 = vpop.f32.mrf.mxu0
    %v901 = vadd.f32 %v744, %v900
    %v902 = vpop.f32.mrf.mxu0
    %903 = vdwg.mxu0
    %904 = vmatprep.subr.mxu0 0.0
    %v905 = vand.u32 %v638, 4294901760
    %v906 = vsub.f32 %v638, %v905
    %907 = vmatpush1.msra.mxu0 %v906
    %908 = vmatprep.subr.mxu0 0.0
    %v909 = vand.u32 %v637, 4294901760
    %v910 = vsub.f32 %v637, %v909
    %911 = vmatpush1.msra.mxu0 %v910
    %912 = vmatprep.subr.mxu0 0.0
    %v913 = vand.u32 %v636, 4294901760
    %v914 = vsub.f32 %v636, %v913
    %915 = vmatpush1.msra.mxu0 %v914
    %916 = vmatprep.subr.mxu0 0.0
    %v917 = vand.u32 %v635, 4294901760
    %v918 = vsub.f32 %v635, %v917
    %919 = vmatpush1.msra.mxu0 %v918
    %920 = vmatprep.subr.mxu0 0.0
    %v921 = vand.u32 %v634, 4294901760
    %v922 = vsub.f32 %v634, %v921
    %923 = vmatpush1.msra.mxu0 %v922
    %924 = vmatprep.subr.mxu0 0.0
    %v925 = vand.u32 %v633, 4294901760
    %v926 = vsub.f32 %v633, %v925
    %927 = vmatpush1.msra.mxu0 %v926
    %928 = vmatprep.subr.mxu0 0.0
    %v929 = vand.u32 %v632, 4294901760
    %v930 = vsub.f32 %v632, %v929
    %931 = vmatpush1.msra.mxu0 %v930
    %932 = vmatprep.subr.mxu0 0.0
    %v933 = vand.u32 %v631, 4294901760
    %v934 = vsub.f32 %v631, %v933
    %935 = vmatpush1.msra.mxu0 %v934
    %936 = vmatprep.subr.mxu0 0.0
    %v937 = vand.u32 %v630, 4294901760
    %v938 = vsub.f32 %v630, %v937
    %939 = vmatpush1.msra.mxu0 %v938
    %940 = vmatprep.subr.mxu0 0.0
    %v941 = vand.u32 %v629, 4294901760
    %v942 = vsub.f32 %v629, %v941
    %943 = vmatpush1.msra.mxu0 %v942
    %944 = vmatprep.subr.mxu0 0.0
    %v945 = vand.u32 %v628, 4294901760
    %v946 = vsub.f32 %v628, %v945
    %947 = vmatpush1.msra.mxu0 %v946
    %948 = vmatprep.subr.mxu0 0.0
    %v949 = vand.u32 %v627, 4294901760
    %v950 = vsub.f32 %v627, %v949
    %951 = vmatpush1.msra.mxu0 %v950
    %952 = vmatprep.subr.mxu0 0.0
    %v953 = vand.u32 %v626, 4294901760
    %v954 = vsub.f32 %v626, %v953
    %955 = vmatpush1.msra.mxu0 %v954
    %956 = vmatprep.subr.mxu0 0.0
    %v957 = vand.u32 %v625, 4294901760
    %v958 = vsub.f32 %v625, %v957
    %959 = vmatpush1.msra.mxu0 %v958
    %960 = vmatprep.subr.mxu0 0.0
    %v961 = vand.u32 %v624, 4294901760
    %v962 = vsub.f32 %v624, %v961
    %963 = vmatpush1.msra.mxu0 %v962
    %964 = vmatprep.subr.mxu0 0.0
    %v965 = vand.u32 %v623, 4294901760
    %v966 = vsub.f32 %v623, %v965
    %967 = vmatpush1.msra.mxu0 %v966
    %968 = vmatprep.subr.mxu0 0.0
    %969 = vmatpush2.msra.mxu0 0.0
    %970 = vmatprep.subr.mxu0 0.0
    %971 = vmatpush2.msra.mxu0 0.0
    %972 = vmatprep.subr.mxu0 0.0
    %973 = vmatpush2.msra.mxu0 0.0
    %974 = vmatprep.subr.mxu0 0.0
    %975 = vmatpush2.msra.mxu0 0.0
    %976 = vmatprep.subr.mxu0 0.0
    %977 = vmatpush2.msra.mxu0 0.0
    %978 = vmatprep.subr.mxu0 0.0
    %979 = vmatpush2.msra.mxu0 0.0
    %980 = vmatprep.subr.mxu0 0.0
    %981 = vmatpush2.msra.mxu0 0.0
    %982 = vmatprep.subr.mxu0 0.0
    %983 = vmatpush2.msra.mxu0 0.0
    %984 = vmatprep.subr.mxu0 0.0
    %985 = vmatpush2.msra.mxu0 0.0
    %986 = vmatprep.subr.mxu0 0.0
    %987 = vmatpush2.msra.mxu0 0.0
    %988 = vmatprep.subr.mxu0 0.0
    %989 = vmatpush2.msra.mxu0 0.0
    %990 = vmatprep.subr.mxu0 0.0
    %991 = vmatpush2.msra.mxu0 0.0
    %992 = vmatprep.subr.mxu0 0.0
    %993 = vmatpush2.msra.mxu0 0.0
    %994 = vmatprep.subr.mxu0 0.0
    %995 = vmatpush2.msra.mxu0 0.0
    %996 = vmatprep.subr.mxu0 0.0
    %997 = vmatpush2.msra.mxu0 0.0
    %998 = vmatprep.subr.mxu0 0.0
    %999 = vmatpush2.msra.mxu0 0.0
    %1000 = vmatprep.mubr.f32.mxu0 0.0
    %v1001 = vand.u32 %v621, 4294901760
    %v1002 = vsub.f32 %v621, %v1001
    %1003 = vmatmul.mubr.f32.gmra.mxu0 %v1002
    %v1004 = vpop.f32.mrf.mxu0
    %v1005 = vadd.f32 %v895, %v1004
    %v1006 = vpop.f32.mrf.mxu0
    %1007 = vmatprep.mubr.f32.mxu0 0.0
    %v1008 = vand.u32 %v622, 4294901760
    %v1009 = vsub.f32 %v622, %v1008
    %1010 = vmatmul.mubr.f32.gmra.mxu0 %v1009
    %v1011 = vpop.f32.mrf.mxu0
    %v1012 = vadd.f32 %v901, %v1011
    %v1013 = vpop.f32.mrf.mxu0
    %1014 = vdwg.mxu0
    %1015 = vmatprep.subr.mxu0 0.0
    %v1016 = vand.u32 %v638, 4294901760
    %1017 = vmatpush1.msra.mxu0 %v1016
    %1018 = vmatprep.subr.mxu0 0.0
    %v1019 = vand.u32 %v637, 4294901760
    %1020 = vmatpush1.msra.mxu0 %v1019
    %1021 = vmatprep.subr.mxu0 0.0
    %v1022 = vand.u32 %v636, 4294901760
    %1023 = vmatpush1.msra.mxu0 %v1022
    %1024 = vmatprep.subr.mxu0 0.0
    %v1025 = vand.u32 %v635, 4294901760
    %1026 = vmatpush1.msra.mxu0 %v1025
    %1027 = vmatprep.subr.mxu0 0.0
    %v1028 = vand.u32 %v634, 4294901760
    %1029 = vmatpush1.msra.mxu0 %v1028
    %1030 = vmatprep.subr.mxu0 0.0
    %v1031 = vand.u32 %v633, 4294901760
    %1032 = vmatpush1.msra.mxu0 %v1031
    %1033 = vmatprep.subr.mxu0 0.0
    %v1034 = vand.u32 %v632, 4294901760
    %1035 = vmatpush1.msra.mxu0 %v1034
    %1036 = vmatprep.subr.mxu0 0.0
    %v1037 = vand.u32 %v631, 4294901760
    %1038 = vmatpush1.msra.mxu0 %v1037
    %1039 = vmatprep.subr.mxu0 0.0
    %v1040 = vand.u32 %v630, 4294901760
    %1041 = vmatpush1.msra.mxu0 %v1040
    %1042 = vmatprep.subr.mxu0 0.0
    %v1043 = vand.u32 %v629, 4294901760
    %1044 = vmatpush1.msra.mxu0 %v1043
    %1045 = vmatprep.subr.mxu0 0.0
    %v1046 = vand.u32 %v628, 4294901760
    %1047 = vmatpush1.msra.mxu0 %v1046
    %1048 = vmatprep.subr.mxu0 0.0
    %v1049 = vand.u32 %v627, 4294901760
    %1050 = vmatpush1.msra.mxu0 %v1049
    %1051 = vmatprep.subr.mxu0 0.0
    %v1052 = vand.u32 %v626, 4294901760
    %1053 = vmatpush1.msra.mxu0 %v1052
    %1054 = vmatprep.subr.mxu0 0.0
    %v1055 = vand.u32 %v625, 4294901760
    %1056 = vmatpush1.msra.mxu0 %v1055
    %1057 = vmatprep.subr.mxu0 0.0
    %v1058 = vand.u32 %v624, 4294901760
    %1059 = vmatpush1.msra.mxu0 %v1058
    %1060 = vmatprep.subr.mxu0 0.0
    %v1061 = vand.u32 %v623, 4294901760
    %1062 = vmatpush1.msra.mxu0 %v1061
    %1063 = vmatprep.subr.mxu0 0.0
    %1064 = vmatpush2.msra.mxu0 0.0
    %1065 = vmatprep.subr.mxu0 0.0
    %1066 = vmatpush2.msra.mxu0 0.0
    %1067 = vmatprep.subr.mxu0 0.0
    %1068 = vmatpush2.msra.mxu0 0.0
    %1069 = vmatprep.subr.mxu0 0.0
    %1070 = vmatpush2.msra.mxu0 0.0
    %1071 = vmatprep.subr.mxu0 0.0
    %1072 = vmatpush2.msra.mxu0 0.0
    %1073 = vmatprep.subr.mxu0 0.0
    %1074 = vmatpush2.msra.mxu0 0.0
    %1075 = vmatprep.subr.mxu0 0.0
    %1076 = vmatpush2.msra.mxu0 0.0
    %1077 = vmatprep.subr.mxu0 0.0
    %1078 = vmatpush2.msra.mxu0 0.0
    %1079 = vmatprep.subr.mxu0 0.0
    %1080 = vmatpush2.msra.mxu0 0.0
    %1081 = vmatprep.subr.mxu0 0.0
    %1082 = vmatpush2.msra.mxu0 0.0
    %1083 = vmatprep.subr.mxu0 0.0
    %1084 = vmatpush2.msra.mxu0 0.0
    %1085 = vmatprep.subr.mxu0 0.0
    %1086 = vmatpush2.msra.mxu0 0.0
    %1087 = vmatprep.subr.mxu0 0.0
    %1088 = vmatpush2.msra.mxu0 0.0
    %1089 = vmatprep.subr.mxu0 0.0
    %1090 = vmatpush2.msra.mxu0 0.0
    %1091 = vmatprep.subr.mxu0 0.0
    %1092 = vmatpush2.msra.mxu0 0.0
    %1093 = vmatprep.subr.mxu0 0.0
    %1094 = vmatpush2.msra.mxu0 0.0
    %1095 = vmatprep.mubr.f32.mxu0 0.0
    %v1096 = vand.u32 %v621, 4294901760
    %v1097 = vsub.f32 %v621, %v1096
    %v1098 = vand.u32 %v1097, 4294901760
    %1099 = vmatmul.mubr.f32.gmra.mxu0 %v1098
    %v1100 = vpop.f32.mrf.mxu0
    %v1101 = vadd.f32 %v1005, %v1100
    %v1102 = vpop.f32.mrf.mxu0
    %1103 = vmatprep.mubr.f32.mxu0 0.0
    %v1104 = vand.u32 %v622, 4294901760
    %v1105 = vsub.f32 %v622, %v1104
    %v1106 = vand.u32 %v1105, 4294901760
    %1107 = vmatmul.mubr.f32.gmra.mxu0 %v1106
    %v1108 = vpop.f32.mrf.mxu0
    %v1109 = vadd.f32 %v1012, %v1108
    %v1110 = vpop.f32.mrf.mxu0
    %1111 = vdwg.mxu0
    %1112 = vmatprep.subr.mxu0 0.0
    %v1113 = vand.u32 %v638, 4294901760
    %v1114 = vsub.f32 %v638, %v1113
    %v1115 = vand.u32 %v1114, 4294901760
    %1116 = vmatpush1.msra.mxu0 %v1115
    %1117 = vmatprep.subr.mxu0 0.0
    %v1118 = vand.u32 %v637, 4294901760
    %v1119 = vsub.f32 %v637, %v1118
    %v1120 = vand.u32 %v1119, 4294901760
    %1121 = vmatpush1.msra.mxu0 %v1120
    %1122 = vmatprep.subr.mxu0 0.0
    %v1123 = vand.u32 %v636, 4294901760
    %v1124 = vsub.f32 %v636, %v1123
    %v1125 = vand.u32 %v1124, 4294901760
    %1126 = vmatpush1.msra.mxu0 %v1125
    %1127 = vmatprep.subr.mxu0 0.0
    %v1128 = vand.u32 %v635, 4294901760
    %v1129 = vsub.f32 %v635, %v1128
    %v1130 = vand.u32 %v1129, 4294901760
    %1131 = vmatpush1.msra.mxu0 %v1130
    %1132 = vmatprep.subr.mxu0 0.0
    %v1133 = vand.u32 %v634, 4294901760
    %v1134 = vsub.f32 %v634, %v1133
    %v1135 = vand.u32 %v1134, 4294901760
    %1136 = vmatpush1.msra.mxu0 %v1135
    %1137 = vmatprep.subr.mxu0 0.0
    %v1138 = vand.u32 %v633, 4294901760
    %v1139 = vsub.f32 %v633, %v1138
    %v1140 = vand.u32 %v1139, 4294901760
    %1141 = vmatpush1.msra.mxu0 %v1140
    %1142 = vmatprep.subr.mxu0 0.0
    %v1143 = vand.u32 %v632, 4294901760
    %v1144 = vsub.f32 %v632, %v1143
    %v1145 = vand.u32 %v1144, 4294901760
    %1146 = vmatpush1.msra.mxu0 %v1145
    %1147 = vmatprep.subr.mxu0 0.0
    %v1148 = vand.u32 %v631, 4294901760
    %v1149 = vsub.f32 %v631, %v1148
    %v1150 = vand.u32 %v1149, 4294901760
    %1151 = vmatpush1.msra.mxu0 %v1150
    %1152 = vmatprep.subr.mxu0 0.0
    %v1153 = vand.u32 %v630, 4294901760
    %v1154 = vsub.f32 %v630, %v1153
    %v1155 = vand.u32 %v1154, 4294901760
    %1156 = vmatpush1.msra.mxu0 %v1155
    %1157 = vmatprep.subr.mxu0 0.0
    %v1158 = vand.u32 %v629, 4294901760
    %v1159 = vsub.f32 %v629, %v1158
    %v1160 = vand.u32 %v1159, 4294901760
    %1161 = vmatpush1.msra.mxu0 %v1160
    %1162 = vmatprep.subr.mxu0 0.0
    %v1163 = vand.u32 %v628, 4294901760
    %v1164 = vsub.f32 %v628, %v1163
    %v1165 = vand.u32 %v1164, 4294901760
    %1166 = vmatpush1.msra.mxu0 %v1165
    %1167 = vmatprep.subr.mxu0 0.0
    %v1168 = vand.u32 %v627, 4294901760
    %v1169 = vsub.f32 %v627, %v1168
    %v1170 = vand.u32 %v1169, 4294901760
    %1171 = vmatpush1.msra.mxu0 %v1170
    %1172 = vmatprep.subr.mxu0 0.0
    %v1173 = vand.u32 %v626, 4294901760
    %v1174 = vsub.f32 %v626, %v1173
    %v1175 = vand.u32 %v1174, 4294901760
    %1176 = vmatpush1.msra.mxu0 %v1175
    %1177 = vmatprep.subr.mxu0 0.0
    %v1178 = vand.u32 %v625, 4294901760
    %v1179 = vsub.f32 %v625, %v1178
    %v1180 = vand.u32 %v1179, 4294901760
    %1181 = vmatpush1.msra.mxu0 %v1180
    %1182 = vmatprep.subr.mxu0 0.0
    %v1183 = vand.u32 %v624, 4294901760
    %v1184 = vsub.f32 %v624, %v1183
    %v1185 = vand.u32 %v1184, 4294901760
    %1186 = vmatpush1.msra.mxu0 %v1185
    %1187 = vmatprep.subr.mxu0 0.0
    %v1188 = vand.u32 %v623, 4294901760
    %v1189 = vsub.f32 %v623, %v1188
    %v1190 = vand.u32 %v1189, 4294901760
    %1191 = vmatpush1.msra.mxu0 %v1190
    %1192 = vmatprep.subr.mxu0 0.0
    %1193 = vmatpush2.msra.mxu0 0.0
    %1194 = vmatprep.subr.mxu0 0.0
    %1195 = vmatpush2.msra.mxu0 0.0
    %1196 = vmatprep.subr.mxu0 0.0
    %1197 = vmatpush2.msra.mxu0 0.0
    %1198 = vmatprep.subr.mxu0 0.0
    %1199 = vmatpush2.msra.mxu0 0.0
    %1200 = vmatprep.subr.mxu0 0.0
    %1201 = vmatpush2.msra.mxu0 0.0
    %1202 = vmatprep.subr.mxu0 0.0
    %1203 = vmatpush2.msra.mxu0 0.0
    %1204 = vmatprep.subr.mxu0 0.0
    %1205 = vmatpush2.msra.mxu0 0.0
    %1206 = vmatprep.subr.mxu0 0.0
    %1207 = vmatpush2.msra.mxu0 0.0
    %1208 = vmatprep.subr.mxu0 0.0
    %1209 = vmatpush2.msra.mxu0 0.0
    %1210 = vmatprep.subr.mxu0 0.0
    %1211 = vmatpush2.msra.mxu0 0.0
    %1212 = vmatprep.subr.mxu0 0.0
    %1213 = vmatpush2.msra.mxu0 0.0
    %1214 = vmatprep.subr.mxu0 0.0
    %1215 = vmatpush2.msra.mxu0 0.0
    %1216 = vmatprep.subr.mxu0 0.0
    %1217 = vmatpush2.msra.mxu0 0.0
    %1218 = vmatprep.subr.mxu0 0.0
    %1219 = vmatpush2.msra.mxu0 0.0
    %1220 = vmatprep.subr.mxu0 0.0
    %1221 = vmatpush2.msra.mxu0 0.0
    %1222 = vmatprep.subr.mxu0 0.0
    %1223 = vmatpush2.msra.mxu0 0.0
    %1224 = vmatprep.mubr.f32.mxu0 0.0
    %v1225 = vand.u32 %v621, 4294901760
    %1226 = vmatmul.mubr.f32.gmra.mxu0 %v1225
    %v1227 = vpop.f32.mrf.mxu0
    %v1228 = vadd.f32 %v1101, %v1227
    %v1229 = vpop.f32.mrf.mxu0
    %1230 = vmatprep.mubr.f32.mxu0 0.0
    %v1231 = vand.u32 %v622, 4294901760
    %1232 = vmatmul.mubr.f32.gmra.mxu0 %v1231
    %v1233 = vpop.f32.mrf.mxu0
    %v1234 = vadd.f32 %v1109, %v1233
    %v1235 = vpop.f32.mrf.mxu0
    %1236 = vdwg.mxu0
    %1237 = vmatprep.subr.mxu0 0.0
    %v1238 = vand.u32 %v638, 4294901760
    %1239 = vmatpush1.msra.mxu0 %v1238
    %1240 = vmatprep.subr.mxu0 0.0
    %v1241 = vand.u32 %v637, 4294901760
    %1242 = vmatpush1.msra.mxu0 %v1241
    %1243 = vmatprep.subr.mxu0 0.0
    %v1244 = vand.u32 %v636, 4294901760
    %1245 = vmatpush1.msra.mxu0 %v1244
    %1246 = vmatprep.subr.mxu0 0.0
    %v1247 = vand.u32 %v635, 4294901760
    %1248 = vmatpush1.msra.mxu0 %v1247
    %1249 = vmatprep.subr.mxu0 0.0
    %v1250 = vand.u32 %v634, 4294901760
    %1251 = vmatpush1.msra.mxu0 %v1250
    %1252 = vmatprep.subr.mxu0 0.0
    %v1253 = vand.u32 %v633, 4294901760
    %1254 = vmatpush1.msra.mxu0 %v1253
    %1255 = vmatprep.subr.mxu0 0.0
    %v1256 = vand.u32 %v632, 4294901760
    %1257 = vmatpush1.msra.mxu0 %v1256
    %1258 = vmatprep.subr.mxu0 0.0
    %v1259 = vand.u32 %v631, 4294901760
    %1260 = vmatpush1.msra.mxu0 %v1259
    %1261 = vmatprep.subr.mxu0 0.0
    %v1262 = vand.u32 %v630, 4294901760
    %1263 = vmatpush1.msra.mxu0 %v1262
    %1264 = vmatprep.subr.mxu0 0.0
    %v1265 = vand.u32 %v629, 4294901760
    %1266 = vmatpush1.msra.mxu0 %v1265
    %1267 = vmatprep.subr.mxu0 0.0
    %v1268 = vand.u32 %v628, 4294901760
    %1269 = vmatpush1.msra.mxu0 %v1268
    %1270 = vmatprep.subr.mxu0 0.0
    %v1271 = vand.u32 %v627, 4294901760
    %1272 = vmatpush1.msra.mxu0 %v1271
    %1273 = vmatprep.subr.mxu0 0.0
    %v1274 = vand.u32 %v626, 4294901760
    %1275 = vmatpush1.msra.mxu0 %v1274
    %1276 = vmatprep.subr.mxu0 0.0
    %v1277 = vand.u32 %v625, 4294901760
    %1278 = vmatpush1.msra.mxu0 %v1277
    %1279 = vmatprep.subr.mxu0 0.0
    %v1280 = vand.u32 %v624, 4294901760
    %1281 = vmatpush1.msra.mxu0 %v1280
    %1282 = vmatprep.subr.mxu0 0.0
    %v1283 = vand.u32 %v623, 4294901760
    %1284 = vmatpush1.msra.mxu0 %v1283
    %1285 = vmatprep.subr.mxu0 0.0
    %1286 = vmatpush2.msra.mxu0 0.0
    %1287 = vmatprep.subr.mxu0 0.0
    %1288 = vmatpush2.msra.mxu0 0.0
    %1289 = vmatprep.subr.mxu0 0.0
    %1290 = vmatpush2.msra.mxu0 0.0
    %1291 = vmatprep.subr.mxu0 0.0
    %1292 = vmatpush2.msra.mxu0 0.0
    %1293 = vmatprep.subr.mxu0 0.0
    %1294 = vmatpush2.msra.mxu0 0.0
    %1295 = vmatprep.subr.mxu0 0.0
    %1296 = vmatpush2.msra.mxu0 0.0
    %1297 = vmatprep.subr.mxu0 0.0
    %1298 = vmatpush2.msra.mxu0 0.0
    %1299 = vmatprep.subr.mxu0 0.0
    %1300 = vmatpush2.msra.mxu0 0.0
    %1301 = vmatprep.subr.mxu0 0.0
    %1302 = vmatpush2.msra.mxu0 0.0
    %1303 = vmatprep.subr.mxu0 0.0
    %1304 = vmatpush2.msra.mxu0 0.0
    %1305 = vmatprep.subr.mxu0 0.0
    %1306 = vmatpush2.msra.mxu0 0.0
    %1307 = vmatprep.subr.mxu0 0.0
    %1308 = vmatpush2.msra.mxu0 0.0
    %1309 = vmatprep.subr.mxu0 0.0
    %1310 = vmatpush2.msra.mxu0 0.0
    %1311 = vmatprep.subr.mxu0 0.0
    %1312 = vmatpush2.msra.mxu0 0.0
    %1313 = vmatprep.subr.mxu0 0.0
    %1314 = vmatpush2.msra.mxu0 0.0
    %1315 = vmatprep.subr.mxu0 0.0
    %1316 = vmatpush2.msra.mxu0 0.0
    %1317 = vmatprep.mubr.f32.mxu0 0.0
    %v1318 = vand.u32 %v621, 4294901760
    %1319 = vmatmul.mubr.f32.gmra.mxu0 %v1318
    %v1320 = vpop.f32.mrf.mxu0
    %v1321 = vadd.f32 %v1228, %v1320
    %v1322 = vpop.f32.mrf.mxu0
    %1323 = vmatprep.mubr.f32.mxu0 0.0
    %v1324 = vand.u32 %v622, 4294901760
    %1325 = vmatmul.mubr.f32.gmra.mxu0 %v1324
    %v1326 = vpop.f32.mrf.mxu0
    %v1327 = vadd.f32 %v1234, %v1326
    %v1328 = vpop.f32.mrf.mxu0
    %1329 = vdwg.mxu0
    %1330 = vst.msk [vmem:[#allocation2] sm:$0xff] %vm34, %v1321
    %1331 = vst.msk [vmem:[#allocation2 + $0x8] sm:$0xff] %vm34, %v1327
    // Predicated region
    $region22: #{tpu_custom_call.1} parent=1 // pred_check
      _
    $region23: #{tpu_custom_call.1} parent=1 // pred_check_branch
      %1333 = sbr.rel (0) target = $region25
    $region24: #{tpu_custom_call.1} parent=1 // pred_region
      %s1335 = ssub.s32 256, 256
      %1336 = vsyncadd [#allocation3], %s1335
      %s1337 = sshll.u32 [#allocation2], 4
      %s1338 = int_to_ptr.vmem [resolvable:$true] %s1337
      %1343 = dma.vmem_to_hbm [thread:$0]  %s1338, 256, %s5, [#allocation3], 128, 128, 8
    $region25: #{tpu_custom_call.1} parent=1 // pred_fallthru
      _
    // Predicated region
    $region26: #{tpu_custom_call.1} parent=1 // pred_check
      _
    $region27: #{tpu_custom_call.1} parent=1 // pred_check_branch
      %1345 = sbr.rel (0) target = $region29
    $region28: #{tpu_custom_call.1} parent=1 // pred_region
      %1346 = dma.done [#allocation3], 256
    $region29: #{tpu_custom_call.1} parent=1 // pred_fallthru
      _
    %1347 = vsyncpa [#allocation3], 1

</llo_original>
